<compile_context>
chip_gen: v5e
topology: v5e:2x2
jax: 0.10.0
libtpu: 0.0.40
codegen_flags: <defaults>
</compile_context>

<pallas_src>
import functools

import jax
import jax.numpy as jnp
from jax import lax
from jax.experimental import pallas as pl
from jax.experimental.pallas import tpu as pltpu


# ---------------------------------------------------------------------------
# Kernel A: node-head MLP + per-split partial segment sums (feat read once)
# ---------------------------------------------------------------------------
def _node_pass_kernel(gid_ref, feat_ref,
                      nw1, nb1, nw2, nb2, nw3t, nb3t,
                      node_out_ref, part_ref,
                      *, n_nodes, tiles_per_split):
    s = pl.program_id(0)          # "parallel" split axis (megacore shardable)
    t = pl.program_id(1)          # "arbitrary" node-tile axis (reduction)

    @pl.when(t == 0)
    def _():
        part_ref[...] = jnp.zeros_like(part_ref)

    cdt = feat_ref.dtype
    tile_m = feat_ref.shape[0]
    g_pad = part_ref.shape[0]

    # Mask rows past the real node count (ragged last tile / clamped overflow
    # tiles).  jnp.where also kills any undefined out-of-bounds values (incl.
    # NaN bit patterns) before they can reach the segment accumulator.
    tile_idx = s * tiles_per_split + t
    row = tile_idx * tile_m + lax.broadcasted_iota(jnp.int32, (tile_m, 1), 0)
    x = jnp.where(row < n_nodes, feat_ref[...], 0)            # (tile_m, d)

    # --- node head MLP (SiLU/bias in f32, MXU accumulates in f32) ----------
    h = jnp.dot(x, nw1[...], preferred_element_type=jnp.float32) + nb1[...]
    h = jax.nn.silu(h).astype(cdt)
    h = jnp.dot(h, nw2[...], preferred_element_type=jnp.float32) + nb2[...]
    h = jax.nn.silu(h).astype(cdt)
    # Final layer computed transposed: out^T = (w3^T) @ h^T, expressed as a
    # contraction of the last dims of the pre-transposed w3 and h, so the HBM
    # store is (out_sublanes x tile_m lanes) instead of (tile_m x 128).
    out_t = lax.dot_general(nw3t[...], h, (((1,), (1,)), ((), ())),
                            preferred_element_type=jnp.float32) + nb3t[...]
    node_out_ref[...] = out_t.astype(node_out_ref.dtype)

    # --- per-split partial segment sums via a (G, tile_m) one-hot on the MXU.
    # TODO(synk): for large graph counts switch to scalar-prefetched per-graph
    # row offsets + contiguous pl.ds slices instead of the one-hot matmul.
    gid = gid_ref[...]                                        # (1, tile_m)
    seg = (lax.broadcasted_iota(jnp.int32, (g_pad, tile_m), 0)
           == gid).astype(cdt)
    part_ref[...] += jnp.dot(seg, x, preferred_element_type=jnp.float32)


# ---------------------------------------------------------------------------
# Kernel B: combine partial segment sums + graph-head MLP (tiny, single step)
# ---------------------------------------------------------------------------
def _graph_head_kernel(part_ref, inv_n_ref, gw1, gb1, gw2, gb2, gw3, gb3,
                       out_ref):
    g_pad = out_ref.shape[0]
    num_splits = part_ref.shape[0] // g_pad
    cdt = gw1.dtype

    total = part_ref[0:g_pad, :]
    for sp in range(1, num_splits):                       # static tiny loop
        total = total + part_ref[sp * g_pad:(sp + 1) * g_pad, :]
    agg = (total * inv_n_ref[...]).astype(cdt)             # segment mean

    h = jnp.dot(agg, gw1[...], preferred_element_type=jnp.float32) + gb1[...]
    h = jax.nn.silu(h).astype(cdt)
    h = jnp.dot(h, gw2[...], preferred_element_type=jnp.float32) + gb2[...]
    h = jax.nn.silu(h).astype(cdt)
    out = jnp.dot(h, gw3[...], preferred_element_type=jnp.float32) + gb3[...]
    out_ref[...] = out.astype(out_ref.dtype)


# ---------------------------------------------------------------------------
# Wrapper
# ---------------------------------------------------------------------------
def _round_up(x, m):
    return (x + m - 1) // m * m


def _hidden_pad(h):
    # full MXU width: 256 on v6e/v7x once real dims reach it, else 128 (v5e)
    return _round_up(h, 256) if h >= 256 else _round_up(h, 128)


def _pad_2d(a, rows, cols):
    return jnp.pad(a, ((0, rows - a.shape[0]), (0, cols - a.shape[1])))


def _pad_node_params(params, hid_pad, out_sub, dtype):
    """Node head: hidden padded lane-dense, final layer pre-transposed.
    Weights cast to compute dtype; biases stay f32 (added post-accumulation)."""
    w1, b1, w2, b2, w3, b3 = params
    in_dim = w1.shape[0]
    return (_pad_2d(w1, in_dim, hid_pad).astype(dtype), _pad_2d(b1, 1, hid_pad),
            _pad_2d(w2, hid_pad, hid_pad).astype(dtype), _pad_2d(b2, 1, hid_pad),
            _pad_2d(w3.T, out_sub, hid_pad).astype(dtype),      # (out_sub, hid)
            _pad_2d(b3.T, out_sub, 1))                          # (out_sub, 1)


def _pad_graph_params(params, in_dim, hid_pad, out_pad, dtype):
    w1, b1, w2, b2, w3, b3 = params
    return (_pad_2d(w1, in_dim, hid_pad).astype(dtype), _pad_2d(b1, 1, hid_pad),
            _pad_2d(w2, hid_pad, hid_pad).astype(dtype), _pad_2d(b2, 1, hid_pad),
            _pad_2d(w3, hid_pad, out_pad).astype(dtype), _pad_2d(b3, 1, out_pad))


def graph_regressor_forward(feat, n_node, node_params, graph_params, *,
                            tile_m=None, num_splits=2,
                            compute_dtype=jnp.bfloat16):
    """GraphRegressor.forward (backbone = identity).

    feat: (N, D) node features, n_node: (G,) int32 nodes-per-graph.
    Returns {'node_pred': (N, node_out), 'graph_pred': (G, graph_out)}.
    """
    n_nodes, latent_dim = feat.shape
    n_graphs = n_node.shape[0]
    node_out_dim = node_params[4].shape[1]
    graph_out_dim = graph_params[4].shape[1]

    itemsize = jnp.dtype(compute_dtype).itemsize
    sublane = 8 if itemsize == 4 else 16              # native sublane tiling
    no_sub = _round_up(node_out_dim, sublane)
    nh_pad = _hidden_pad(node_params[0].shape[1])
    gh_pad = _hidden_pad(graph_params[0].shape[1])
    go_pad = _round_up(graph_out_dim, 128)            # tiny (G rows) -> harmless
    g_pad = _round_up(n_graphs, 8)

    # --- tiling: big lane-aligned node tiles, optional megacore split ------
    if tile_m is None:
        tile_m = 1024 if itemsize < 4 else 512
    tile_m = max(128, min(_round_up(tile_m, 128), _round_up(n_nodes, 128)))
    num_tiles = pl.cdiv(n_nodes, tile_m)
    num_splits = max(1, min(num_splits, num_tiles))
    tps = pl.cdiv(num_tiles, num_splits)              # tiles per split
    total_tiles = num_splits * tps
    n_lanes = total_tiles * tile_m
    last_blk = num_tiles - 1

    # feat is streamed without a full pad copy (ragged tail handled in-kernel);
    # only a dtype-cast copy when the backbone output is not already bf16.
    feat_c = feat if feat.dtype == compute_dtype else feat.astype(compute_dtype)

    node_p = _pad_node_params(node_params, nh_pad, no_sub, compute_dtype)
    graph_p = _pad_graph_params(graph_params, latent_dim, gh_pad, go_pad,
                                compute_dtype)

    # per-node graph ids (padded tail gets an out-of-range id), 1 / n_node
    gid = jnp.repeat(jnp.arange(n_graphs, dtype=jnp.int32), n_node,
                     total_repeat_length=n_nodes)
    gid = jnp.pad(gid, (0, n_lanes - n_nodes),
                  constant_values=n_graphs).reshape(1, n_lanes)
    inv_n = 1.0 / jnp.maximum(n_node, 1).astype(jnp.float32)   # guard empties
    inv_n = jnp.pad(inv_n, (0, g_pad - n_graphs)).reshape(g_pad, 1)

    wspec = lambda shape: pl.BlockSpec(shape, lambda s, t: (0, 0))

    node_out_t, partials = pl.pallas_call(
        functools.partial(_node_pass_kernel, n_nodes=n_nodes,
                          tiles_per_split=tps),
        out_shape=(jax.ShapeDtypeStruct((no_sub, n_lanes), compute_dtype),
                   jax.ShapeDtypeStruct((num_splits * g_pad, latent_dim),
                                        jnp.float32)),
        grid=(num_splits, tps),
        in_specs=[
            pl.BlockSpec((1, tile_m), lambda s, t: (0, s * tps + t)),   # gid
            pl.BlockSpec((tile_m, latent_dim),                          # feat
                         lambda s, t: (jnp.minimum(s * tps + t, last_blk), 0)),
            wspec(node_p[0].shape), wspec(node_p[1].shape),
            wspec(node_p[2].shape), wspec(node_p[3].shape),
            wspec(node_p[4].shape), wspec(node_p[5].shape),
        ],
        out_specs=[
            pl.BlockSpec((no_sub, tile_m), lambda s, t: (0, s * tps + t)),
            pl.BlockSpec((g_pad, latent_dim), lambda s, t: (s, 0)),
        ],
        compiler_params=pltpu.CompilerParams(
            # split axis is parallel (megacore on v7x); tile axis is a
            # reduction for the per-split partial sums -> "arbitrary".
            dimension_semantics=("parallel", "arbitrary"),
            vmem_limit_bytes=32 * 1024 * 1024),
    )(gid, feat_c, *node_p)

    # tiny combine + graph-head MLP; everything fits in VMEM as full blocks
    graph_out = pl.pallas_call(
        _graph_head_kernel,
        out_shape=jax.ShapeDtypeStruct((g_pad, go_pad), jnp.float32),
    )(partials, inv_n, *graph_p)

    node_pred = node_out_t[:node_out_dim, :n_nodes].T.astype(jnp.float32)
    graph_pred = graph_out[:n_graphs, :graph_out_dim]
    return {"node_pred": node_pred, "graph_pred": graph_pred}


# ---------------------------------------------------------------------------
# Parameter init + pure-JAX reference
# ---------------------------------------------------------------------------
def _init_mlp_params(key, in_dim, hidden, out_dim):
    """build_mlp(input=in_dim, hidden=[hidden]*2, output=out_dim) parameters."""
    ks = jax.random.split(key, 6)
    scale = lambda d: 1.0 / jnp.sqrt(d)
    w1 = jax.random.normal(ks[0], (in_dim, hidden), jnp.float32) * scale(in_dim)
    b1 = jax.random.normal(ks[1], (1, hidden), jnp.float32) * 0.01
    w2 = jax.random.normal(ks[2], (hidden, hidden), jnp.float32) * scale(hidden)
    b2 = jax.random.normal(ks[3], (1, hidden), jnp.float32) * 0.01
    w3 = jax.random.normal(ks[4], (hidden, out_dim), jnp.float32) * scale(hidden)
    b3 = jax.random.normal(ks[5], (1, out_dim), jnp.float32) * 0.01
    return (w1, b1, w2, b2, w3, b3)


def _mlp_ref(x, params):
    w1, b1, w2, b2, w3, b3 = params
    h = jax.nn.silu(x @ w1 + b1)
    h = jax.nn.silu(h @ w2 + b2)
    return h @ w3 + b3


def _segment_mean_ref(feat, n_node):
    gid = jnp.repeat(jnp.arange(n_node.shape[0]), n_node,
                     total_repeat_length=feat.shape[0])
    sums = jax.ops.segment_sum(feat, gid, num_segments=n_node.shape[0])
    return sums / jnp.maximum(n_node, 1).astype(jnp.float32)[:, None]


# ---------------------------------------------------------------------------
# Main
# ---------------------------------------------------------------------------
if __name__ == "__main__":
    key = jax.random.PRNGKey(0)
    k_feat, k_node, k_graph = jax.random.split(key, 3)

    # small shapes consistent with the module (non-multiple-of-tile node count
    # exercises the ragged-last-tile masking path)
    num_nodes = 19       # total nodes across the batch of graphs
    latent_dim = 32      # backbone latent dim
    hidden = 32          # mlp_hidden_dim (num_mlp_layers = 2)
    node_out_dim = 3     # e.g. forces target dim
    graph_out_dim = 1    # e.g. energy target dim
    n_node = jnp.array([10, 9], dtype=jnp.int32)   # 2 graphs

    feat = jax.random.normal(k_feat, (num_nodes, latent_dim), jnp.float32)
    node_params = _init_mlp_params(k_node, latent_dim, hidden, node_out_dim)
    graph_params = _init_mlp_params(k_graph, latent_dim, hidden, graph_out_dim)

    node_ref = _mlp_ref(feat, node_params)
    graph_ref = _mlp_ref(_segment_mean_ref(feat, n_node), graph_params)

    # default path: bf16 streaming / bf16 MXU inputs, f32 accumulation
    out_bf16 = jax.block_until_ready(
        graph_regressor_forward(feat, n_node, node_params, graph_params))
    assert jnp.allclose(out_bf16["node_pred"], node_ref, atol=0.2, rtol=0.1)
    assert jnp.allclose(out_bf16["graph_pred"], graph_ref, atol=0.2, rtol=0.1)

    # f32 compute path (tight check against reference)
    out_f32 = jax.block_until_ready(
        graph_regressor_forward(feat, n_node, node_params, graph_params,
                                compute_dtype=jnp.float32))
    assert jnp.allclose(out_f32["node_pred"], node_ref, atol=1e-4, rtol=1e-4)
    assert jnp.allclose(out_f32["graph_pred"], graph_ref, atol=1e-4, rtol=1e-4)

    print("KERNEL_OK")
</pallas_src>

<mosaic_0001>
module attributes {stable_mosaic.version = 11 : i64} {
  func.func @_node_pass_kernel(%arg0: i32, %arg1: i32, %arg2: memref<1x128xi32, #tpu.memory_space<vmem>>, %arg3: memref<128x32xbf16, #tpu.memory_space<vmem>>, %arg4: memref<32x128xbf16, #tpu.memory_space<vmem>>, %arg5: memref<1x128xf32, #tpu.memory_space<vmem>>, %arg6: memref<128x128xbf16, #tpu.memory_space<vmem>>, %arg7: memref<1x128xf32, #tpu.memory_space<vmem>>, %arg8: memref<16x128xbf16, #tpu.memory_space<vmem>>, %arg9: memref<16x1xf32, #tpu.memory_space<vmem>>, %arg10: memref<16x128xbf16, #tpu.memory_space<vmem>>, %arg11: memref<8x32xf32, #tpu.memory_space<vmem>>) attributes {dimension_semantics = [#tpu.dimension_semantics<parallel>, #tpu.dimension_semantics<arbitrary>], iteration_bounds = array<i64: 1, 1>, scalar_prefetch = 0 : i64, scratch_operands = 0 : i64, tpu.core_type = #tpu.core_type<tc>, window_params = [{transform_indices = @transform_0, window_bounds = array<i64: 1, 128>}, {transform_indices = @transform_1, window_bounds = array<i64: 128, 32>}, {pipeline_mode = #tpu.pipeline_mode<synchronous>, transform_indices = @transform_2, window_bounds = array<i64: 32, 128>}, {pipeline_mode = #tpu.pipeline_mode<synchronous>, transform_indices = @transform_3, window_bounds = array<i64: 1, 128>}, {pipeline_mode = #tpu.pipeline_mode<synchronous>, transform_indices = @transform_4, window_bounds = array<i64: 128, 128>}, {pipeline_mode = #tpu.pipeline_mode<synchronous>, transform_indices = @transform_5, window_bounds = array<i64: 1, 128>}, {pipeline_mode = #tpu.pipeline_mode<synchronous>, transform_indices = @transform_6, window_bounds = array<i64: 16, 128>}, {pipeline_mode = #tpu.pipeline_mode<synchronous>, transform_indices = @transform_7, window_bounds = array<i64: 16, 1>}, {transform_indices = @transform_8, window_bounds = array<i64: 16, 128>}, {transform_indices = @transform_9, window_bounds = array<i64: 8, 32>}]} {
    %c0_i32 = arith.constant 0 : i32
    %0 = arith.cmpi eq, %arg1, %c0_i32 : i32
    %1 = arith.extui %0 : i1 to i32
    %c0_i32_0 = arith.constant 0 : i32
    %2 = arith.cmpi ne, %1, %c0_i32_0 : i32
    scf.if %2 {
      %cst_28 = arith.constant 0.000000e+00 : f32
      %59 = vector.broadcast %cst_28 : f32 to vector<8x32xf32>
      %c0_29 = arith.constant 0 : index
      %c0_30 = arith.constant 0 : index
      %60 = vector.load %arg11[%c0_29, %c0_30] : memref<8x32xf32, #tpu.memory_space<vmem>>, vector<8x32xf32>
      tpu.vector_store %arg11[%c0_29, %c0_30], %59 {strides = array<i32>} : memref<8x32xf32, #tpu.memory_space<vmem>>, vector<8x32xf32>,
    } else {
    }
    %c1_i32 = arith.constant 1 : i32
    %3 = arith.muli %arg0, %c1_i32 : i32
    %4 = arith.addi %3, %arg1 : i32
    %c128_i32 = arith.constant 128 : i32
    %5 = arith.muli %4, %c128_i32 : i32
    %6 = tpu.iota {dimensions = array<i32: 0>} : vector<128x1xi32>
    %7 = vector.broadcast %5 : i32 to vector<128x1xi32>
    %8 = arith.addi %7, %6 : vector<128x1xi32>
    %c19_i32 = arith.constant 19 : i32
    %9 = vector.broadcast %c19_i32 : i32 to vector<128x1xi32>
    %10 = arith.cmpi slt, %8, %9 : vector<128x1xi32>
    %c0 = arith.constant 0 : index
    %c0_1 = arith.constant 0 : index
    %11 = vector.load %arg3[%c0, %c0_1] : memref<128x32xbf16, #tpu.memory_space<vmem>>, vector<128x32xbf16>
    %c0_i32_2 = arith.constant 0 : i32
    %12 = arith.sitofp %c0_i32_2 : i32 to bf16
    %13 = vector.shape_cast %10 : vector<128x1xi1> to vector<128x1xi1>
    %14 = vector.broadcast %13 : vector<128x1xi1> to vector<128x32xi1>
    %15 = vector.broadcast %12 : bf16 to vector<128x32xbf16>
    %16 = arith.select %14, %11, %15 : vector<128x32xi1>, vector<128x32xbf16>
    %c0_3 = arith.constant 0 : index
    %c0_4 = arith.constant 0 : index
    %17 = vector.load %arg4[%c0_3, %c0_4] : memref<32x128xbf16, #tpu.memory_space<vmem>>, vector<32x128xbf16>
    %cst = arith.constant dense<0.000000e+00> : vector<128x128xf32>
    %18 = tpu.matmul %16, %17, %cst {dimension_numbers = #tpu.dot_dimension_numbers<[1], [0], [0], [1], [0, 0, 1, 1], [], []>} : vector<128x32xbf16>, vector<32x128xbf16>, vector<128x128xf32> -> vector<128x128xf32>
    %c0_5 = arith.constant 0 : index
    %c0_6 = arith.constant 0 : index
    %19 = vector.load %arg5[%c0_5, %c0_6] : memref<1x128xf32, #tpu.memory_space<vmem>>, vector<1x128xf32>
    %20 = vector.broadcast %19 : vector<1x128xf32> to vector<128x128xf32>
    %21 = arith.addf %18, %20 : vector<128x128xf32>
    %22 = arith.negf %21 : vector<128x128xf32>
    %23 = math.exp %22 : vector<128x128xf32>
    %cst_7 = arith.constant 1.000000e+00 : f32
    %24 = vector.broadcast %cst_7 : f32 to vector<128x128xf32>
    %25 = arith.addf %24, %23 : vector<128x128xf32>
    %26 = arith.divf %24, %25 : vector<128x128xf32>
    %27 = arith.mulf %21, %26 : vector<128x128xf32>
    %28 = arith.truncf %27 : vector<128x128xf32> to vector<128x128xbf16>
    %c0_8 = arith.constant 0 : index
    %c0_9 = arith.constant 0 : index
    %29 = vector.load %arg6[%c0_8, %c0_9] : memref<128x128xbf16, #tpu.memory_space<vmem>>, vector<128x128xbf16>
    %cst_10 = arith.constant dense<0.000000e+00> : vector<128x128xf32>
    %30 = tpu.matmul %28, %29, %cst_10 {dimension_numbers = #tpu.dot_dimension_numbers<[1], [0], [0], [1], [0, 0, 1, 1], [], []>} : vector<128x128xbf16>, vector<128x128xbf16>, vector<128x128xf32> -> vector<128x128xf32>
    %c0_11 = arith.constant 0 : index
    %c0_12 = arith.constant 0 : index
    %31 = vector.load %arg7[%c0_11, %c0_12] : memref<1x128xf32, #tpu.memory_space<vmem>>, vector<1x128xf32>
    %32 = vector.broadcast %31 : vector<1x128xf32> to vector<128x128xf32>
    %33 = arith.addf %30, %32 : vector<128x128xf32>
    %34 = arith.negf %33 : vector<128x128xf32>
    %35 = math.exp %34 : vector<128x128xf32>
    %cst_13 = arith.constant 1.000000e+00 : f32
    %36 = vector.broadcast %cst_13 : f32 to vector<128x128xf32>
    %37 = arith.addf %36, %35 : vector<128x128xf32>
    %38 = arith.divf %36, %37 : vector<128x128xf32>
    %39 = arith.mulf %33, %38 : vector<128x128xf32>
    %40 = arith.truncf %39 : vector<128x128xf32> to vector<128x128xbf16>
    %c0_14 = arith.constant 0 : index
    %c0_15 = arith.constant 0 : index
    %41 = vector.load %arg8[%c0_14, %c0_15] : memref<16x128xbf16, #tpu.memory_space<vmem>>, vector<16x128xbf16>
    %cst_16 = arith.constant dense<0.000000e+00> : vector<16x128xf32>
    %42 = tpu.matmul %41, %40, %cst_16 {dimension_numbers = #tpu.dot_dimension_numbers<[1], [1], [0], [0], [0, 0, 1, 0], [], []>} : vector<16x128xbf16>, vector<128x128xbf16>, vector<16x128xf32> -> vector<16x128xf32>
    %c0_17 = arith.constant 0 : index
    %c0_18 = arith.constant 0 : index
    %43 = vector.load %arg9[%c0_17, %c0_18] : memref<16x1xf32, #tpu.memory_space<vmem>>, vector<16x1xf32>
    %44 = vector.broadcast %43 : vector<16x1xf32> to vector<16x128xf32>
    %45 = arith.addf %42, %44 : vector<16x128xf32>
    %46 = arith.truncf %45 : vector<16x128xf32> to vector<16x128xbf16>
    %c0_19 = arith.constant 0 : index
    %c0_20 = arith.constant 0 : index
    %47 = vector.load %arg10[%c0_19, %c0_20] : memref<16x128xbf16, #tpu.memory_space<vmem>>, vector<16x128xbf16>
    tpu.vector_store %arg10[%c0_19, %c0_20], %46 {strides = array<i32>} : memref<16x128xbf16, #tpu.memory_space<vmem>>, vector<16x128xbf16>,
    %c0_21 = arith.constant 0 : index
    %c0_22 = arith.constant 0 : index
    %48 = vector.load %arg2[%c0_21, %c0_22] : memref<1x128xi32, #tpu.memory_space<vmem>>, vector<1x128xi32>
    %49 = tpu.iota {dimensions = array<i32: 0>} : vector<8x128xi32>
    %50 = vector.broadcast %48 : vector<1x128xi32> to vector<8x128xi32>
    %51 = arith.cmpi eq, %49, %50 : vector<8x128xi32>
    %52 = arith.extui %51 : vector<8x128xi1> to vector<8x128xi32>
    %53 = arith.sitofp %52 : vector<8x128xi32> to vector<8x128xf32>
    %54 = arith.truncf %53 : vector<8x128xf32> to vector<8x128xbf16>
    %c0_23 = arith.constant 0 : index
    %c0_24 = arith.constant 0 : index
    %55 = vector.load %arg11[%c0_23, %c0_24] : memref<8x32xf32, #tpu.memory_space<vmem>>, vector<8x32xf32>
    %cst_25 = arith.constant dense<0.000000e+00> : vector<8x32xf32>
    %56 = tpu.matmul %54, %16, %cst_25 {dimension_numbers = #tpu.dot_dimension_numbers<[1], [0], [0], [1], [0, 0, 1, 1], [], []>} : vector<8x128xbf16>, vector<128x32xbf16>, vector<8x32xf32> -> vector<8x32xf32>
    %57 = arith.addf %55, %56 : vector<8x32xf32>
    %c0_26 = arith.constant 0 : index
    %c0_27 = arith.constant 0 : index
    %58 = vector.load %arg11[%c0_26, %c0_27] : memref<8x32xf32, #tpu.memory_space<vmem>>, vector<8x32xf32>
    tpu.vector_store %arg11[%c0_26, %c0_27], %57 {strides = array<i32>} : memref<8x32xf32, #tpu.memory_space<vmem>>, vector<8x32xf32>,
    return
  }
  func.func @transform_0(%arg0: i32, %arg1: i32) -> (i32, i32) {
    %c1_i32 = arith.constant 1 : i32
    %0 = arith.muli %arg0, %c1_i32 : i32
    %1 = arith.addi %0, %arg1 : i32
    %c0_i32 = arith.constant 0 : i32
    %c0_i32_0 = arith.constant 0 : i32
    return %c0_i32, %1 : i32, i32
  }
  func.func @transform_1(%arg0: i32, %arg1: i32) -> (i32, i32) {
    %c1_i32 = arith.constant 1 : i32
    %0 = arith.muli %arg0, %c1_i32 : i32
    %1 = arith.addi %0, %arg1 : i32
    %c0_i32 = arith.constant 0 : i32
    %2 = arith.minsi %1, %c0_i32 : i32
    %c0_i32_0 = arith.constant 0 : i32
    %c0_i32_1 = arith.constant 0 : i32
    return %2, %c0_i32_0 : i32, i32
  }
  func.func @transform_2(%arg0: i32, %arg1: i32) -> (i32, i32) {
    %c0_i32 = arith.constant 0 : i32
    %c0_i32_0 = arith.constant 0 : i32
    %c0_i32_1 = arith.constant 0 : i32
    return %c0_i32, %c0_i32_0 : i32, i32
  }
  func.func @transform_3(%arg0: i32, %arg1: i32) -> (i32, i32) {
    %c0_i32 = arith.constant 0 : i32
    %c0_i32_0 = arith.constant 0 : i32
    %c0_i32_1 = arith.constant 0 : i32
    return %c0_i32, %c0_i32_0 : i32, i32
  }
  func.func @transform_4(%arg0: i32, %arg1: i32) -> (i32, i32) {
    %c0_i32 = arith.constant 0 : i32
    %c0_i32_0 = arith.constant 0 : i32
    %c0_i32_1 = arith.constant 0 : i32
    return %c0_i32, %c0_i32_0 : i32, i32
  }
  func.func @transform_5(%arg0: i32, %arg1: i32) -> (i32, i32) {
    %c0_i32 = arith.constant 0 : i32
    %c0_i32_0 = arith.constant 0 : i32
    %c0_i32_1 = arith.constant 0 : i32
    return %c0_i32, %c0_i32_0 : i32, i32
  }
  func.func @transform_6(%arg0: i32, %arg1: i32) -> (i32, i32) {
    %c0_i32 = arith.constant 0 : i32
    %c0_i32_0 = arith.constant 0 : i32
    %c0_i32_1 = arith.constant 0 : i32
    return %c0_i32, %c0_i32_0 : i32, i32
  }
  func.func @transform_7(%arg0: i32, %arg1: i32) -> (i32, i32) {
    %c0_i32 = arith.constant 0 : i32
    %c0_i32_0 = arith.constant 0 : i32
    %c0_i32_1 = arith.constant 0 : i32
    return %c0_i32, %c0_i32_0 : i32, i32
  }
  func.func @transform_8(%arg0: i32, %arg1: i32) -> (i32, i32) {
    %c1_i32 = arith.constant 1 : i32
    %0 = arith.muli %arg0, %c1_i32 : i32
    %1 = arith.addi %0, %arg1 : i32
    %c0_i32 = arith.constant 0 : i32
    %c0_i32_0 = arith.constant 0 : i32
    return %c0_i32, %1 : i32, i32
  }
  func.func @transform_9(%arg0: i32, %arg1: i32) -> (i32, i32) {
    %c0_i32 = arith.constant 0 : i32
    %c0_i32_0 = arith.constant 0 : i32
    return %arg0, %c0_i32 : i32, i32
  }
}

</mosaic_0001>

<llo_original>
// kernel: tpu_custom_call.1
$region0: #{tpu_custom_call.1}
  #allocation0 [shape = 'u32[]', space=smem, size = 0x4, offset = 0x4, fixed_abs, tag = 'smem constant byte address 0x4 - core index']
  #allocation1 [shape = 'u32[72,128]{1,0:T(1,128)}', space=vmem, size = 0x9000, scoped, tag = 'internal scratch']
  %s0 = inlined_call_operand.vmem [shape: s32[1,128], index: 0, kind: input, shape index: {}]
  %s1 = inlined_call_operand.hbm [shape: bf16[19,32], index: 1, kind: input, shape index: {}]
  %s2 = inlined_call_operand.vmem [shape: bf16[32,128], index: 2, kind: input, shape index: {}]
  %s3 = inlined_call_operand.vmem [shape: f32[1,128], index: 3, kind: input, shape index: {}]
  %s4 = inlined_call_operand.hbm [shape: bf16[128,128], index: 4, kind: input, shape index: {}]
  %s5 = inlined_call_operand.vmem [shape: f32[1,128], index: 5, kind: input, shape index: {}]
  %s6 = inlined_call_operand.hbm [shape: bf16[16,128], index: 6, kind: input, shape index: {}]
  %s7 = inlined_call_operand.vmem [shape: f32[16,1], index: 7, kind: input, shape index: {}]
  %s8 = inlined_call_operand.hbm [shape: bf16[16,128], index: 8, kind: output, shape index: {0}]
  %s9 = inlined_call_operand.hbm [shape: f32[8,32], index: 9, kind: output, shape index: {1}]
  %10 = xla_tuple %s8, %s9
  %s11 = sld [smem:[#allocation0]]
  $region66: #{tpu_custom_call.1} parent=0
    _
  %s13 = ssub.s32 1, %s11
  %s14 = scalar_select 0, %s13, %s11
  $region1: #{tpu_custom_call.1} parent=0
    #allocation2 [shape = 'u8[32768]{0}', space=vmem, size = 0x8000, scoped, tag = 'input window, operand 1, single buffered']
    #allocation3 [shape = 's32[1]{0}', space=sflag, size = 0x4, scoped, tag = 'scoped memory for tpu_custom_call.1']
    #allocation4 [shape = 's32[1]{0}', space=sflag, size = 0x4, scoped, tag = 'scoped memory for tpu_custom_call.1']
    #allocation5 [shape = 'u8[32768]{0}', space=vmem, size = 0x8000, scoped, tag = 'input window, operand 4, single buffered']
    #allocation6 [shape = 's32[1]{0}', space=sflag, size = 0x4, scoped, tag = 'scoped memory for tpu_custom_call.1']
    #allocation7 [shape = 'u8[4096]{0}', space=vmem, size = 0x1000, scoped, tag = 'input window, operand 6, single buffered']
    #allocation8 [shape = 'u8[4096]{0}', space=vmem, size = 0x1000, scoped, tag = 'output window, operand 0, single buffered']
    #allocation9 [shape = 'u8[4096]{0}', space=vmem, size = 0x1000, scoped, tag = 'output window, operand 1, single buffered']
    #allocation10 [shape = 's32[1]{0}', space=sflag, size = 0x4, scoped, tag = 'scoped memory for tpu_custom_call.1']
    %15 = vsyncpa [#allocation3], 0
    %16 = vsyncpa [#allocation6], 0
    %17 = vsyncpa [#allocation4], 0
    %18 = vsyncpa [#allocation10], 0
    // Predicated region
    $region2: #{tpu_custom_call.1} parent=1 // pred_check
      _
    $region3: #{tpu_custom_call.1} parent=1 // pred_check_branch
      %20 = sbr.rel (0) target = $region5
    $region4: #{tpu_custom_call.1} parent=1 // pred_region
      %s21 = sadd.s32 0, 0
      %p22 = scmp.lt.s32.totalorder %s21, 0
      %s23 = scalar_select %p22, %s21, 0
      %s24 = scalar_lea.vmem %s0, %s23
      %s25 = sadd.s32 0, 0
    $region5: #{tpu_custom_call.1} parent=1 // pred_fallthru
      _
    // Predicated region
    $region6: #{tpu_custom_call.1} parent=1 // pred_check
      _
    $region7: #{tpu_custom_call.1} parent=1 // pred_check_branch
      %27 = sbr.rel (0) target = $region9
    $region8: #{tpu_custom_call.1} parent=1 // pred_region
      %s28 = sadd.s32 0, 0
      %p29 = scmp.lt.s32.totalorder %s28, 0
      %s30 = scalar_select %p29, %s28, 0
      %s31 = smul.u32 16, %s30
      %s32 = ssub.s32 3, %s31
      %s33 = smul.u32 4, %s32
      %s34 = ssub.s32 64, %s33
      %s35 = sshll.u32 %s34, 4
      %36 = vsyncadd [#allocation3], %s35
      %p37 = scmp.ne.s32.totalorder 0, %s33
      %s38 = smul.addr %s31, 4
      %s39 = scalar_lea.hbm %s1, %s38
      %s40 = smul.u32 4, %s32
      %s41 = sshll.u32 %s39, 4
      %s42 = int_to_ptr.hbm [resolvable:$true] %s41
      %s43 = sshll.u32 [#allocation2], 4
      %s44 = int_to_ptr.vmem [resolvable:$true] %s43
      %s45 = sshll.u32 %s40, 4
      %49 = dma.hbm_to_vmem [thread:$0]  (%p37), %s42, %s45, %s44, [#allocation3], 64, 64, 4
    $region9: #{tpu_custom_call.1} parent=1 // pred_fallthru
      _
    // Predicated region
    $region10: #{tpu_custom_call.1} parent=1 // pred_check
      _
    $region11: #{tpu_custom_call.1} parent=1 // pred_check_branch
      %51 = sbr.rel (0) target = $region13
    $region12: #{tpu_custom_call.1} parent=1 // pred_region
      _
    $region13: #{tpu_custom_call.1} parent=1 // pred_fallthru
      _
    // Predicated region
    $region14: #{tpu_custom_call.1} parent=1 // pred_check
      _
    $region15: #{tpu_custom_call.1} parent=1 // pred_check_branch
      %53 = sbr.rel (0) target = $region17
    $region16: #{tpu_custom_call.1} parent=1 // pred_region
      _
    $region17: #{tpu_custom_call.1} parent=1 // pred_fallthru
      _
    // Predicated region
    $region18: #{tpu_custom_call.1} parent=1 // pred_check
      _
    $region19: #{tpu_custom_call.1} parent=1 // pred_check_branch
      %55 = sbr.rel (0) target = $region21
    $region20: #{tpu_custom_call.1} parent=1 // pred_region
      %57 = vsyncadd [#allocation6], 0
      %s58 = sshll.u32 %s4, 4
      %s59 = int_to_ptr.hbm [resolvable:$true] %s58
      %s60 = sshll.u32 [#allocation5], 4
      %s61 = int_to_ptr.vmem [resolvable:$true] %s60
      %66 = dma.hbm_to_vmem [thread:$0]  %s59, 1024, %s61, [#allocation6], 64, 64, 4
    $region21: #{tpu_custom_call.1} parent=1 // pred_fallthru
      _
    // Predicated region
    $region22: #{tpu_custom_call.1} parent=1 // pred_check
      _
    $region23: #{tpu_custom_call.1} parent=1 // pred_check_branch
      %68 = sbr.rel (0) target = $region25
    $region24: #{tpu_custom_call.1} parent=1 // pred_region
      _
    $region25: #{tpu_custom_call.1} parent=1 // pred_fallthru
      _
    // Predicated region
    $region26: #{tpu_custom_call.1} parent=1 // pred_check
      _
    $region27: #{tpu_custom_call.1} parent=1 // pred_check_branch
      %70 = sbr.rel (0) target = $region29
    $region28: #{tpu_custom_call.1} parent=1 // pred_region
      %72 = vsyncadd [#allocation6], 0
      %s73 = sshll.u32 %s6, 4
      %s74 = int_to_ptr.hbm [resolvable:$true] %s73
      %s75 = sshll.u32 [#allocation7], 4
      %s76 = int_to_ptr.vmem [resolvable:$true] %s75
      %81 = dma.hbm_to_vmem [thread:$0]  %s74, 128, %s76, [#allocation6], 64, 64, 4
    $region29: #{tpu_custom_call.1} parent=1 // pred_fallthru
      _
    // Predicated region
    $region30: #{tpu_custom_call.1} parent=1 // pred_check
      _
    $region31: #{tpu_custom_call.1} parent=1 // pred_check_branch
      %83 = sbr.rel (0) target = $region33
    $region32: #{tpu_custom_call.1} parent=1 // pred_region
      _
    $region33: #{tpu_custom_call.1} parent=1 // pred_fallthru
      _
    // Predicated region
    $region34: #{tpu_custom_call.1} parent=1 // pred_check
      _
    $region35: #{tpu_custom_call.1} parent=1 // pred_check_branch
      %85 = sbr.rel (0) target = $region37
    $region36: #{tpu_custom_call.1} parent=1 // pred_region
      %87 = dma.done [#allocation3], 1024
    $region37: #{tpu_custom_call.1} parent=1 // pred_fallthru
      _
    // Predicated region
    $region38: #{tpu_custom_call.1} parent=1 // pred_check
      _
    $region39: #{tpu_custom_call.1} parent=1 // pred_check_branch
      %89 = sbr.rel (0) target = $region41
    $region40: #{tpu_custom_call.1} parent=1 // pred_region
      %91 = dma.done [#allocation6], 1024
    $region41: #{tpu_custom_call.1} parent=1 // pred_fallthru
      _
    // Predicated region
    $region42: #{tpu_custom_call.1} parent=1 // pred_check
      _
    $region43: #{tpu_custom_call.1} parent=1 // pred_check_branch
      %93 = sbr.rel (0) target = $region45
    $region44: #{tpu_custom_call.1} parent=1 // pred_region
      %95 = dma.done [#allocation6], 128
    $region45: #{tpu_custom_call.1} parent=1 // pred_fallthru
      _
    %s96 = sadd.s32 0, 0
    %p97 = scmp.lt.s32.totalorder %s96, 0
    %s98 = scalar_select %p97, %s96, 0
    %s99 = scalar_lea.vmem %s0, %s98
    %s100 = sadd.s32 0, 0
    %p101 = scmp.lt.s32.totalorder %s100, 0
    %s102 = scalar_select %p101, %s100, 0
    %s103 = scalar_lea.vmem %s0, %s102
    %s104 = sadd.s32 0, 0
    %s105 = sadd.s32 0, 0
    %p106 = scmp.lt.s32.totalorder %s105, 0
    %s107 = scalar_select %p106, %s105, 0
    %s108 = smul.u32 16, %s107
    %s109 = ssub.s32 3, %s108
    %s110 = smul.u32 4, %s109
    %s111 = sadd.s32 0, 0
    %p113 = scmp.eq.s32.totalorder 0, 0
    // Predicated region
    $region46: #{tpu_custom_call.1} parent=1 // pred_check
      %p114 = pneg %p113
    $region47: #{tpu_custom_call.1} parent=1 // pred_check_branch
      %116 = sbr.rel (%p114) target = $region49
    $region48: #{tpu_custom_call.1} parent=1 // pred_region
      %vm117 = vcmask 261120
      %118 = vst.msk [vmem:[#allocation9] sm:$0xff] %vm117, 0.0
    $region49: #{tpu_custom_call.1} parent=1 // pred_fallthru
      _
    %s119 = sadd.s32 0, 0
    %s120 = smul.u32 %s119, 128
    %v121 = vlaneseq
    %v122 = vshrl.u32 %v121, 7
    %v123 = vadd.s32 %v122, 8
    %v124 = vadd.s32 %v122, 16
    %v125 = vadd.s32 %v122, 24
    %v126 = vadd.s32 %v122, 32
    %v127 = vadd.s32 %v122, 40
    %v128 = vadd.s32 %v122, 48
    %v129 = vadd.s32 %v122, 56
    %v130 = vadd.s32 %v122, 64
    %v131 = vadd.s32 %v122, 72
    %v132 = vadd.s32 %v122, 80
    %v133 = vadd.s32 %v122, 88
    %v134 = vadd.s32 %v122, 96
    %v135 = vadd.s32 %v122, 104
    %v136 = vadd.s32 %v122, 112
    %v137 = vadd.s32 %v122, 120
    %v138 = vstv %s120
    %v139 = vadd.s32 %v138, %v122
    %v140 = vadd.s32 %v138, %v123
    %v141 = vadd.s32 %v138, %v124
    %v142 = vadd.s32 %v138, %v125
    %v143 = vadd.s32 %v138, %v126
    %v144 = vadd.s32 %v138, %v127
    %v145 = vadd.s32 %v138, %v128
    %v146 = vadd.s32 %v138, %v129
    %v147 = vadd.s32 %v138, %v130
    %v148 = vadd.s32 %v138, %v131
    %v149 = vadd.s32 %v138, %v132
    %v150 = vadd.s32 %v138, %v133
    %v151 = vadd.s32 %v138, %v134
    %v152 = vadd.s32 %v138, %v135
    %v153 = vadd.s32 %v138, %v136
    %v154 = vadd.s32 %v138, %v137
    %vm155 = vcmp.lt.s32.totalorder %v139, 19
    %vm156 = vcmp.lt.s32.totalorder %v140, 19
    %vm157 = vcmp.lt.s32.totalorder %v141, 19
    %vm158 = vcmp.lt.s32.totalorder %v142, 19
    %vm159 = vcmp.lt.s32.totalorder %v143, 19
    %vm160 = vcmp.lt.s32.totalorder %v144, 19
    %vm161 = vcmp.lt.s32.totalorder %v145, 19
    %vm162 = vcmp.lt.s32.totalorder %v146, 19
    %vm163 = vcmp.lt.s32.totalorder %v147, 19
    %vm164 = vcmp.lt.s32.totalorder %v148, 19
    %vm165 = vcmp.lt.s32.totalorder %v149, 19
    %vm166 = vcmp.lt.s32.totalorder %v150, 19
    %vm167 = vcmp.lt.s32.totalorder %v151, 19
    %vm168 = vcmp.lt.s32.totalorder %v152, 19
    %vm169 = vcmp.lt.s32.totalorder %v153, 19
    %vm170 = vcmp.lt.s32.totalorder %v154, 19
    %v171 = vld [vmem:[#allocation2] sm:$0xf]
    %v172 = vld [vmem:[#allocation2 + $0x4] sm:$0xf]
    %v173 = vld [vmem:[#allocation2 + $0x8] sm:$0xf]
    %v174 = vld [vmem:[#allocation2 + $0xc] sm:$0xf]
    %v175 = vld [vmem:[#allocation2 + $0x10] sm:$0xf]
    %v176 = vld [vmem:[#allocation2 + $0x14] sm:$0xf]
    %v177 = vld [vmem:[#allocation2 + $0x18] sm:$0xf]
    %v178 = vld [vmem:[#allocation2 + $0x1c] sm:$0xf]
    %v179 = vld [vmem:[#allocation2 + $0x20] sm:$0xf]
    %v180 = vld [vmem:[#allocation2 + $0x24] sm:$0xf]
    %v181 = vld [vmem:[#allocation2 + $0x28] sm:$0xf]
    %v182 = vld [vmem:[#allocation2 + $0x2c] sm:$0xf]
    %v183 = vld [vmem:[#allocation2 + $0x30] sm:$0xf]
    %v184 = vld [vmem:[#allocation2 + $0x34] sm:$0xf]
    %v185 = vld [vmem:[#allocation2 + $0x38] sm:$0xf]
    %v186 = vld [vmem:[#allocation2 + $0x3c] sm:$0xf]
    %v187 = vsel %vm155, 1, 0
    %v188 = vsel %vm156, 1, 0
    %v189 = vsel %vm157, 1, 0
    %v190 = vsel %vm158, 1, 0
    %v191 = vsel %vm159, 1, 0
    %v192 = vsel %vm160, 1, 0
    %v193 = vsel %vm161, 1, 0
    %v194 = vsel %vm162, 1, 0
    %v195 = vsel %vm163, 1, 0
    %v196 = vsel %vm164, 1, 0
    %v197 = vsel %vm165, 1, 0
    %v198 = vsel %vm166, 1, 0
    %v199 = vsel %vm167, 1, 0
    %v200 = vsel %vm168, 1, 0
    %v201 = vsel %vm169, 1, 0
    %v202 = vsel %vm170, 1, 0
    %vm203 = vcmp.eq.s32.totalorder %v187, 1
    %vm204 = vcmp.eq.s32.totalorder %v188, 1
    %vm205 = vcmp.eq.s32.totalorder %v189, 1
    %vm206 = vcmp.eq.s32.totalorder %v190, 1
    %vm207 = vcmp.eq.s32.totalorder %v191, 1
    %vm208 = vcmp.eq.s32.totalorder %v192, 1
    %vm209 = vcmp.eq.s32.totalorder %v193, 1
    %vm210 = vcmp.eq.s32.totalorder %v194, 1
    %vm211 = vcmp.eq.s32.totalorder %v195, 1
    %vm212 = vcmp.eq.s32.totalorder %v196, 1
    %vm213 = vcmp.eq.s32.totalorder %v197, 1
    %vm214 = vcmp.eq.s32.totalorder %v198, 1
    %vm215 = vcmp.eq.s32.totalorder %v199, 1
    %vm216 = vcmp.eq.s32.totalorder %v200, 1
    %vm217 = vcmp.eq.s32.totalorder %v201, 1
    %vm218 = vcmp.eq.s32.totalorder %v202, 1
    %vm219 = vmpackc.low %vm203, %vm203
    %vm220 = vmpackc.low %vm204, %vm204
    %vm221 = vmpackc.low %vm205, %vm205
    %vm222 = vmpackc.low %vm206, %vm206
    %vm223 = vmpackc.low %vm207, %vm207
    %vm224 = vmpackc.low %vm208, %vm208
    %vm225 = vmpackc.low %vm209, %vm209
    %vm226 = vmpackc.low %vm210, %vm210
    %vm227 = vmpackc.low %vm211, %vm211
    %vm228 = vmpackc.low %vm212, %vm212
    %vm229 = vmpackc.low %vm213, %vm213
    %vm230 = vmpackc.low %vm214, %vm214
    %vm231 = vmpackc.low %vm215, %vm215
    %vm232 = vmpackc.low %vm216, %vm216
    %vm233 = vmpackc.low %vm217, %vm217
    %vm234 = vmpackc.low %vm218, %vm218
    %v235 = vsel %vm219, %v171, 0
    %v236 = vsel %vm220, %v172, 0
    %v237 = vsel %vm221, %v173, 0
    %v238 = vsel %vm222, %v174, 0
    %v239 = vsel %vm223, %v175, 0
    %v240 = vsel %vm224, %v176, 0
    %v241 = vsel %vm225, %v177, 0
    %v242 = vsel %vm226, %v178, 0
    %v243 = vsel %vm227, %v179, 0
    %v244 = vsel %vm228, %v180, 0
    %v245 = vsel %vm229, %v181, 0
    %v246 = vsel %vm230, %v182, 0
    %v247 = vsel %vm231, %v183, 0
    %v248 = vsel %vm232, %v184, 0
    %v249 = vsel %vm233, %v185, 0
    %v250 = vsel %vm234, %v186, 0
    %v251 = vld [vmem:[%s2] sm:$0xf]
    %v252 = vld [vmem:[%s2 + $0x4] sm:$0xf]
    %v253 = vld [vmem:[%s2 + $0x8] sm:$0xf]
    %v254 = vld [vmem:[%s2 + $0xc] sm:$0xf]
    %v255 = vld [vmem:[%s3] sm:$0x1]
    %v257 = vperm.slane %v255, 0
    %v275 = vunpack.c.l.b16 %v235
    %v276 = vunpack.c.l.b16 %v236
    %v277 = vunpack.c.l.b16 %v237
    %v278 = vunpack.c.l.b16 %v238
    %v279 = vunpack.c.l.b16 %v239
    %v280 = vunpack.c.l.b16 %v240
    %v281 = vunpack.c.l.b16 %v241
    %v282 = vunpack.c.l.b16 %v242
    %v283 = vunpack.c.l.b16 %v243
    %v284 = vunpack.c.l.b16 %v244
    %v285 = vunpack.c.l.b16 %v245
    %v286 = vunpack.c.l.b16 %v246
    %v287 = vunpack.c.l.b16 %v247
    %v288 = vunpack.c.l.b16 %v248
    %v289 = vunpack.c.l.b16 %v249
    %v290 = vunpack.c.l.b16 %v250
    %v291 = vpack.c.b16 %v276, %v275
    %v292 = vpack.c.b16 %v278, %v277
    %v293 = vpack.c.b16 %v280, %v279
    %v294 = vpack.c.b16 %v282, %v281
    %v295 = vpack.c.b16 %v284, %v283
    %v296 = vpack.c.b16 %v286, %v285
    %v297 = vpack.c.b16 %v288, %v287
    %v298 = vpack.c.b16 %v290, %v289
    %v303 = vunpack.c.l.b16 %v251
    %v304 = vunpack.c.l.b16 %v252
    %v305 = vunpack.c.l.b16 %v253
    %v306 = vunpack.c.l.b16 %v254
    %v307 = vpack.c.b16 %v304, %v303
    %v308 = vpack.c.b16 %v306, %v305
    %vm311 = vcmask 261120
    %v313 = vsel %vm311, %v291, 0
    %v316 = vsel %vm311, %v292, 0
    %v319 = vsel %vm311, %v293, 0
    %v322 = vsel %vm311, %v294, 0
    %v325 = vsel %vm311, %v295, 0
    %v328 = vsel %vm311, %v296, 0
    %v331 = vsel %vm311, %v297, 0
    %v334 = vsel %vm311, %v298, 0
    %336 = vmatpush.bf16.msra.mxu0 0
    %337 = vmatpush.bf16.msra.mxu0 0
    %338 = vmatpush.bf16.msra.mxu0 0
    %339 = vmatpush.bf16.msra.mxu0 0
    %340 = vmatpush.bf16.msra.mxu0 0
    %341 = vmatpush.bf16.msra.mxu0 0
    %342 = vmatpush.bf16.msra.mxu0 %v308
    %343 = vmatpush.bf16.msra.mxu0 %v307
    %344 = vmatmul.bf16.gmra.mxu0 %v313
    %v345 = vpop.f32.mrf.mxu0
    %v346 = vadd.f32 %v257, %v345
    %v347 = vpop.f32.mrf.mxu0
    %v348 = vadd.f32 %v257, %v347
    %349 = vmatmul.bf16.gmra.mxu0 %v316
    %v350 = vpop.f32.mrf.mxu0
    %v351 = vadd.f32 %v257, %v350
    %v352 = vpop.f32.mrf.mxu0
    %v353 = vadd.f32 %v257, %v352
    %354 = vmatmul.bf16.gmra.mxu0 %v319
    %v355 = vpop.f32.mrf.mxu0
    %v356 = vadd.f32 %v257, %v355
    %v357 = vpop.f32.mrf.mxu0
    %v358 = vadd.f32 %v257, %v357
    %359 = vmatmul.bf16.gmra.mxu0 %v322
    %v360 = vpop.f32.mrf.mxu0
    %v361 = vadd.f32 %v257, %v360
    %v362 = vpop.f32.mrf.mxu0
    %v363 = vadd.f32 %v257, %v362
    %364 = vmatmul.bf16.gmra.mxu0 %v325
    %v365 = vpop.f32.mrf.mxu0
    %v366 = vadd.f32 %v257, %v365
    %v367 = vpop.f32.mrf.mxu0
    %v368 = vadd.f32 %v257, %v367
    %369 = vmatmul.bf16.gmra.mxu0 %v328
    %v370 = vpop.f32.mrf.mxu0
    %v371 = vadd.f32 %v257, %v370
    %v372 = vpop.f32.mrf.mxu0
    %v373 = vadd.f32 %v257, %v372
    %374 = vmatmul.bf16.gmra.mxu0 %v331
    %v375 = vpop.f32.mrf.mxu0
    %v376 = vadd.f32 %v257, %v375
    %v377 = vpop.f32.mrf.mxu0
    %v378 = vadd.f32 %v257, %v377
    %379 = vmatmul.bf16.gmra.mxu0 %v334
    %v380 = vpop.f32.mrf.mxu0
    %v381 = vadd.f32 %v257, %v380
    %v382 = vpop.f32.mrf.mxu0
    %v383 = vadd.f32 %v257, %v382
    %384 = vdwg.mxu0
    %v385 = vxor.u32 %v346, 2147483648
    %v386 = vxor.u32 %v348, 2147483648
    %v387 = vxor.u32 %v351, 2147483648
    %v388 = vxor.u32 %v353, 2147483648
    %v389 = vxor.u32 %v356, 2147483648
    %v390 = vxor.u32 %v358, 2147483648
    %v391 = vxor.u32 %v361, 2147483648
    %v392 = vxor.u32 %v363, 2147483648
    %v393 = vxor.u32 %v366, 2147483648
    %v394 = vxor.u32 %v368, 2147483648
    %v395 = vxor.u32 %v371, 2147483648
    %v396 = vxor.u32 %v373, 2147483648
    %v397 = vxor.u32 %v376, 2147483648
    %v398 = vxor.u32 %v378, 2147483648
    %v399 = vxor.u32 %v381, 2147483648
    %v400 = vxor.u32 %v383, 2147483648
    %v401 = vmul.f32 %v385, 1.442695
    %v402 = vpow.pop %v401
    %v403 = vmul.f32 %v386, 1.442695
    %v404 = vpow.pop %v403
    %v405 = vmul.f32 %v387, 1.442695
    %v406 = vpow.pop %v405
    %v407 = vmul.f32 %v388, 1.442695
    %v408 = vpow.pop %v407
    %v409 = vmul.f32 %v389, 1.442695
    %v410 = vpow.pop %v409
    %v411 = vmul.f32 %v390, 1.442695
    %v412 = vpow.pop %v411
    %v413 = vmul.f32 %v391, 1.442695
    %v414 = vpow.pop %v413
    %v415 = vmul.f32 %v392, 1.442695
    %v416 = vpow.pop %v415
    %v417 = vmul.f32 %v393, 1.442695
    %v418 = vpow.pop %v417
    %v419 = vmul.f32 %v394, 1.442695
    %v420 = vpow.pop %v419
    %v421 = vmul.f32 %v395, 1.442695
    %v422 = vpow.pop %v421
    %v423 = vmul.f32 %v396, 1.442695
    %v424 = vpow.pop %v423
    %v425 = vmul.f32 %v397, 1.442695
    %v426 = vpow.pop %v425
    %v427 = vmul.f32 %v398, 1.442695
    %v428 = vpow.pop %v427
    %v429 = vmul.f32 %v399, 1.442695
    %v430 = vpow.pop %v429
    %v431 = vmul.f32 %v400, 1.442695
    %v432 = vpow.pop %v431
    %v433 = vadd.f32 %v402, 1.0
    %v434 = vadd.f32 %v404, 1.0
    %v435 = vadd.f32 %v406, 1.0
    %v436 = vadd.f32 %v408, 1.0
    %v437 = vadd.f32 %v410, 1.0
    %v438 = vadd.f32 %v412, 1.0
    %v439 = vadd.f32 %v414, 1.0
    %v440 = vadd.f32 %v416, 1.0
    %v441 = vadd.f32 %v418, 1.0
    %v442 = vadd.f32 %v420, 1.0
    %v443 = vadd.f32 %v422, 1.0
    %v444 = vadd.f32 %v424, 1.0
    %v445 = vadd.f32 %v426, 1.0
    %v446 = vadd.f32 %v428, 1.0
    %v447 = vadd.f32 %v430, 1.0
    %v448 = vadd.f32 %v432, 1.0
    %v449 = vrcp.pop %v433
    %v450 = vmul.f32 %v433, %v449
    %v451 = vsub.f32 1.0, %v450
    %v452 = vmul.f32 %v449, %v451
    %v453 = vadd.f32 %v449, %v452
    %vm454 = vweird.f32 %v433
    %vm455 = vweird.f32 %v449
    %vm456 = vmor %vm454, %vm455
    %v457 = vsel %vm456, %v449, %v453
    %v458 = vand.u32 2147483647, %v433
    %vm459 = vcmp.eq.f32.partialorder %v458, 8.507059e+37
    %v460 = vand.u32 %v433, 2147483648
    %v461 = vor.u32 1.1754944e-38, %v460
    %v462 = vsel %vm459, %v461, %v457
    %v463 = vmul.f32 1.0, %v462
    %v464 = vrcp.pop %v434
    %v465 = vmul.f32 %v434, %v464
    %v466 = vsub.f32 1.0, %v465
    %v467 = vmul.f32 %v464, %v466
    %v468 = vadd.f32 %v464, %v467
    %vm469 = vweird.f32 %v434
    %vm470 = vweird.f32 %v464
    %vm471 = vmor %vm469, %vm470
    %v472 = vsel %vm471, %v464, %v468
    %v473 = vand.u32 2147483647, %v434
    %vm474 = vcmp.eq.f32.partialorder %v473, 8.507059e+37
    %v475 = vand.u32 %v434, 2147483648
    %v476 = vor.u32 1.1754944e-38, %v475
    %v477 = vsel %vm474, %v476, %v472
    %v478 = vmul.f32 1.0, %v477
    %v479 = vrcp.pop %v435
    %v480 = vmul.f32 %v435, %v479
    %v481 = vsub.f32 1.0, %v480
    %v482 = vmul.f32 %v479, %v481
    %v483 = vadd.f32 %v479, %v482
    %vm484 = vweird.f32 %v435
    %vm485 = vweird.f32 %v479
    %vm486 = vmor %vm484, %vm485
    %v487 = vsel %vm486, %v479, %v483
    %v488 = vand.u32 2147483647, %v435
    %vm489 = vcmp.eq.f32.partialorder %v488, 8.507059e+37
    %v490 = vand.u32 %v435, 2147483648
    %v491 = vor.u32 1.1754944e-38, %v490
    %v492 = vsel %vm489, %v491, %v487
    %v493 = vmul.f32 1.0, %v492
    %v494 = vrcp.pop %v436
    %v495 = vmul.f32 %v436, %v494
    %v496 = vsub.f32 1.0, %v495
    %v497 = vmul.f32 %v494, %v496
    %v498 = vadd.f32 %v494, %v497
    %vm499 = vweird.f32 %v436
    %vm500 = vweird.f32 %v494
    %vm501 = vmor %vm499, %vm500
    %v502 = vsel %vm501, %v494, %v498
    %v503 = vand.u32 2147483647, %v436
    %vm504 = vcmp.eq.f32.partialorder %v503, 8.507059e+37
    %v505 = vand.u32 %v436, 2147483648
    %v506 = vor.u32 1.1754944e-38, %v505
    %v507 = vsel %vm504, %v506, %v502
    %v508 = vmul.f32 1.0, %v507
    %v509 = vrcp.pop %v437
    %v510 = vmul.f32 %v437, %v509
    %v511 = vsub.f32 1.0, %v510
    %v512 = vmul.f32 %v509, %v511
    %v513 = vadd.f32 %v509, %v512
    %vm514 = vweird.f32 %v437
    %vm515 = vweird.f32 %v509
    %vm516 = vmor %vm514, %vm515
    %v517 = vsel %vm516, %v509, %v513
    %v518 = vand.u32 2147483647, %v437
    %vm519 = vcmp.eq.f32.partialorder %v518, 8.507059e+37
    %v520 = vand.u32 %v437, 2147483648
    %v521 = vor.u32 1.1754944e-38, %v520
    %v522 = vsel %vm519, %v521, %v517
    %v523 = vmul.f32 1.0, %v522
    %v524 = vrcp.pop %v438
    %v525 = vmul.f32 %v438, %v524
    %v526 = vsub.f32 1.0, %v525
    %v527 = vmul.f32 %v524, %v526
    %v528 = vadd.f32 %v524, %v527
    %vm529 = vweird.f32 %v438
    %vm530 = vweird.f32 %v524
    %vm531 = vmor %vm529, %vm530
    %v532 = vsel %vm531, %v524, %v528
    %v533 = vand.u32 2147483647, %v438
    %vm534 = vcmp.eq.f32.partialorder %v533, 8.507059e+37
    %v535 = vand.u32 %v438, 2147483648
    %v536 = vor.u32 1.1754944e-38, %v535
    %v537 = vsel %vm534, %v536, %v532
    %v538 = vmul.f32 1.0, %v537
    %v539 = vrcp.pop %v439
    %v540 = vmul.f32 %v439, %v539
    %v541 = vsub.f32 1.0, %v540
    %v542 = vmul.f32 %v539, %v541
    %v543 = vadd.f32 %v539, %v542
    %vm544 = vweird.f32 %v439
    %vm545 = vweird.f32 %v539
    %vm546 = vmor %vm544, %vm545
    %v547 = vsel %vm546, %v539, %v543
    %v548 = vand.u32 2147483647, %v439
    %vm549 = vcmp.eq.f32.partialorder %v548, 8.507059e+37
    %v550 = vand.u32 %v439, 2147483648
    %v551 = vor.u32 1.1754944e-38, %v550
    %v552 = vsel %vm549, %v551, %v547
    %v553 = vmul.f32 1.0, %v552
    %v554 = vrcp.pop %v440
    %v555 = vmul.f32 %v440, %v554
    %v556 = vsub.f32 1.0, %v555
    %v557 = vmul.f32 %v554, %v556
    %v558 = vadd.f32 %v554, %v557
    %vm559 = vweird.f32 %v440
    %vm560 = vweird.f32 %v554
    %vm561 = vmor %vm559, %vm560
    %v562 = vsel %vm561, %v554, %v558
    %v563 = vand.u32 2147483647, %v440
    %vm564 = vcmp.eq.f32.partialorder %v563, 8.507059e+37
    %v565 = vand.u32 %v440, 2147483648
    %v566 = vor.u32 1.1754944e-38, %v565
    %v567 = vsel %vm564, %v566, %v562
    %v568 = vmul.f32 1.0, %v567
    %v569 = vrcp.pop %v441
    %v570 = vmul.f32 %v441, %v569
    %v571 = vsub.f32 1.0, %v570
    %v572 = vmul.f32 %v569, %v571
    %v573 = vadd.f32 %v569, %v572
    %vm574 = vweird.f32 %v441
    %vm575 = vweird.f32 %v569
    %vm576 = vmor %vm574, %vm575
    %v577 = vsel %vm576, %v569, %v573
    %v578 = vand.u32 2147483647, %v441
    %vm579 = vcmp.eq.f32.partialorder %v578, 8.507059e+37
    %v580 = vand.u32 %v441, 2147483648
    %v581 = vor.u32 1.1754944e-38, %v580
    %v582 = vsel %vm579, %v581, %v577
    %v583 = vmul.f32 1.0, %v582
    %v584 = vrcp.pop %v442
    %v585 = vmul.f32 %v442, %v584
    %v586 = vsub.f32 1.0, %v585
    %v587 = vmul.f32 %v584, %v586
    %v588 = vadd.f32 %v584, %v587
    %vm589 = vweird.f32 %v442
    %vm590 = vweird.f32 %v584
    %vm591 = vmor %vm589, %vm590
    %v592 = vsel %vm591, %v584, %v588
    %v593 = vand.u32 2147483647, %v442
    %vm594 = vcmp.eq.f32.partialorder %v593, 8.507059e+37
    %v595 = vand.u32 %v442, 2147483648
    %v596 = vor.u32 1.1754944e-38, %v595
    %v597 = vsel %vm594, %v596, %v592
    %v598 = vmul.f32 1.0, %v597
    %v599 = vrcp.pop %v443
    %v600 = vmul.f32 %v443, %v599
    %v601 = vsub.f32 1.0, %v600
    %v602 = vmul.f32 %v599, %v601
    %v603 = vadd.f32 %v599, %v602
    %vm604 = vweird.f32 %v443
    %vm605 = vweird.f32 %v599
    %vm606 = vmor %vm604, %vm605
    %v607 = vsel %vm606, %v599, %v603
    %v608 = vand.u32 2147483647, %v443
    %vm609 = vcmp.eq.f32.partialorder %v608, 8.507059e+37
    %v610 = vand.u32 %v443, 2147483648
    %v611 = vor.u32 1.1754944e-38, %v610
    %v612 = vsel %vm609, %v611, %v607
    %v613 = vmul.f32 1.0, %v612
    %v614 = vrcp.pop %v444
    %v615 = vmul.f32 %v444, %v614
    %v616 = vsub.f32 1.0, %v615
    %v617 = vmul.f32 %v614, %v616
    %v618 = vadd.f32 %v614, %v617
    %vm619 = vweird.f32 %v444
    %vm620 = vweird.f32 %v614
    %vm621 = vmor %vm619, %vm620
    %v622 = vsel %vm621, %v614, %v618
    %v623 = vand.u32 2147483647, %v444
    %vm624 = vcmp.eq.f32.partialorder %v623, 8.507059e+37
    %v625 = vand.u32 %v444, 2147483648
    %v626 = vor.u32 1.1754944e-38, %v625
    %v627 = vsel %vm624, %v626, %v622
    %v628 = vmul.f32 1.0, %v627
    %v629 = vrcp.pop %v445
    %v630 = vmul.f32 %v445, %v629
    %v631 = vsub.f32 1.0, %v630
    %v632 = vmul.f32 %v629, %v631
    %v633 = vadd.f32 %v629, %v632
    %vm634 = vweird.f32 %v445
    %vm635 = vweird.f32 %v629
    %vm636 = vmor %vm634, %vm635
    %v637 = vsel %vm636, %v629, %v633
    %v638 = vand.u32 2147483647, %v445
    %vm639 = vcmp.eq.f32.partialorder %v638, 8.507059e+37
    %v640 = vand.u32 %v445, 2147483648
    %v641 = vor.u32 1.1754944e-38, %v640
    %v642 = vsel %vm639, %v641, %v637
    %v643 = vmul.f32 1.0, %v642
    %v644 = vrcp.pop %v446
    %v645 = vmul.f32 %v446, %v644
    %v646 = vsub.f32 1.0, %v645
    %v647 = vmul.f32 %v644, %v646
    %v648 = vadd.f32 %v644, %v647
    %vm649 = vweird.f32 %v446
    %vm650 = vweird.f32 %v644
    %vm651 = vmor %vm649, %vm650
    %v652 = vsel %vm651, %v644, %v648
    %v653 = vand.u32 2147483647, %v446
    %vm654 = vcmp.eq.f32.partialorder %v653, 8.507059e+37
    %v655 = vand.u32 %v446, 2147483648
    %v656 = vor.u32 1.1754944e-38, %v655
    %v657 = vsel %vm654, %v656, %v652
    %v658 = vmul.f32 1.0, %v657
    %v659 = vrcp.pop %v447
    %v660 = vmul.f32 %v447, %v659
    %v661 = vsub.f32 1.0, %v660
    %v662 = vmul.f32 %v659, %v661
    %v663 = vadd.f32 %v659, %v662
    %vm664 = vweird.f32 %v447
    %vm665 = vweird.f32 %v659
    %vm666 = vmor %vm664, %vm665
    %v667 = vsel %vm666, %v659, %v663
    %v668 = vand.u32 2147483647, %v447
    %vm669 = vcmp.eq.f32.partialorder %v668, 8.507059e+37
    %v670 = vand.u32 %v447, 2147483648
    %v671 = vor.u32 1.1754944e-38, %v670
    %v672 = vsel %vm669, %v671, %v667
    %v673 = vmul.f32 1.0, %v672
    %v674 = vrcp.pop %v448
    %v675 = vmul.f32 %v448, %v674
    %v676 = vsub.f32 1.0, %v675
    %v677 = vmul.f32 %v674, %v676
    %v678 = vadd.f32 %v674, %v677
    %vm679 = vweird.f32 %v448
    %vm680 = vweird.f32 %v674
    %vm681 = vmor %vm679, %vm680
    %v682 = vsel %vm681, %v674, %v678
    %v683 = vand.u32 2147483647, %v448
    %vm684 = vcmp.eq.f32.partialorder %v683, 8.507059e+37
    %v685 = vand.u32 %v448, 2147483648
    %v686 = vor.u32 1.1754944e-38, %v685
    %v687 = vsel %vm684, %v686, %v682
    %v688 = vmul.f32 1.0, %v687
    %v689 = vmul.f32 %v346, %v463
    %v690 = vmul.f32 %v348, %v478
    %v691 = vmul.f32 %v351, %v493
    %v692 = vmul.f32 %v353, %v508
    %v693 = vmul.f32 %v356, %v523
    %v694 = vmul.f32 %v358, %v538
    %v695 = vmul.f32 %v361, %v553
    %v696 = vmul.f32 %v363, %v568
    %v697 = vmul.f32 %v366, %v583
    %v698 = vmul.f32 %v368, %v598
    %v699 = vmul.f32 %v371, %v613
    %v700 = vmul.f32 %v373, %v628
    %v701 = vmul.f32 %v376, %v643
    %v702 = vmul.f32 %v378, %v658
    %v703 = vmul.f32 %v381, %v673
    %v704 = vmul.f32 %v383, %v688
    %v705 = vpack.c.bf16 %v690, %v689
    %v706 = vpack.c.bf16 %v692, %v691
    %v707 = vpack.c.bf16 %v694, %v693
    %v708 = vpack.c.bf16 %v696, %v695
    %v709 = vpack.c.bf16 %v698, %v697
    %v710 = vpack.c.bf16 %v700, %v699
    %v711 = vpack.c.bf16 %v702, %v701
    %v712 = vpack.c.bf16 %v704, %v703
    %v713 = vld [vmem:[#allocation5] sm:$0xf]
    %v714 = vld [vmem:[#allocation5 + $0x4] sm:$0xf]
    %v715 = vld [vmem:[#allocation5 + $0x8] sm:$0xf]
    %v716 = vld [vmem:[#allocation5 + $0xc] sm:$0xf]
    %v717 = vld [vmem:[#allocation5 + $0x10] sm:$0xf]
    %v718 = vld [vmem:[#allocation5 + $0x14] sm:$0xf]
    %v719 = vld [vmem:[#allocation5 + $0x18] sm:$0xf]
    %v720 = vld [vmem:[#allocation5 + $0x1c] sm:$0xf]
    %v721 = vld [vmem:[#allocation5 + $0x20] sm:$0xf]
    %v722 = vld [vmem:[#allocation5 + $0x24] sm:$0xf]
    %v723 = vld [vmem:[#allocation5 + $0x28] sm:$0xf]
    %v724 = vld [vmem:[#allocation5 + $0x2c] sm:$0xf]
    %v725 = vld [vmem:[#allocation5 + $0x30] sm:$0xf]
    %v726 = vld [vmem:[#allocation5 + $0x34] sm:$0xf]
    %v727 = vld [vmem:[#allocation5 + $0x38] sm:$0xf]
    %v728 = vld [vmem:[#allocation5 + $0x3c] sm:$0xf]
    %v729 = vld [vmem:[%s5] sm:$0x1]
    %v731 = vperm.slane %v729, 0
    %v749 = vunpack.c.l.b16 %v713
    %v750 = vunpack.c.l.b16 %v714
    %v751 = vunpack.c.l.b16 %v715
    %v752 = vunpack.c.l.b16 %v716
    %v753 = vunpack.c.l.b16 %v717
    %v754 = vunpack.c.l.b16 %v718
    %v755 = vunpack.c.l.b16 %v719
    %v756 = vunpack.c.l.b16 %v720
    %v757 = vunpack.c.l.b16 %v721
    %v758 = vunpack.c.l.b16 %v722
    %v759 = vunpack.c.l.b16 %v723
    %v760 = vunpack.c.l.b16 %v724
    %v761 = vunpack.c.l.b16 %v725
    %v762 = vunpack.c.l.b16 %v726
    %v763 = vunpack.c.l.b16 %v727
    %v764 = vunpack.c.l.b16 %v728
    %v765 = vpack.c.b16 %v750, %v749
    %v766 = vpack.c.b16 %v752, %v751
    %v767 = vpack.c.b16 %v754, %v753
    %v768 = vpack.c.b16 %v756, %v755
    %v769 = vpack.c.b16 %v758, %v757
    %v770 = vpack.c.b16 %v760, %v759
    %v771 = vpack.c.b16 %v762, %v761
    %v772 = vpack.c.b16 %v764, %v763
    %781 = vmatpush.bf16.msra.mxu0 %v772
    %782 = vmatpush.bf16.msra.mxu0 %v771
    %783 = vmatpush.bf16.msra.mxu0 %v770
    %784 = vmatpush.bf16.msra.mxu0 %v769
    %785 = vmatpush.bf16.msra.mxu0 %v768
    %786 = vmatpush.bf16.msra.mxu0 %v767
    %787 = vmatpush.bf16.msra.mxu0 %v766
    %788 = vmatpush.bf16.msra.mxu0 %v765
    %789 = vmatmul.bf16.gmra.mxu0 %v705
    %v790 = vpop.f32.mrf.mxu0
    %v791 = vadd.f32 %v731, %v790
    %v792 = vpop.f32.mrf.mxu0
    %v793 = vadd.f32 %v731, %v792
    %794 = vmatmul.bf16.gmra.mxu0 %v706
    %v795 = vpop.f32.mrf.mxu0
    %v796 = vadd.f32 %v731, %v795
    %v797 = vpop.f32.mrf.mxu0
    %v798 = vadd.f32 %v731, %v797
    %799 = vmatmul.bf16.gmra.mxu0 %v707
    %v800 = vpop.f32.mrf.mxu0
    %v801 = vadd.f32 %v731, %v800
    %v802 = vpop.f32.mrf.mxu0
    %v803 = vadd.f32 %v731, %v802
    %804 = vmatmul.bf16.gmra.mxu0 %v708
    %v805 = vpop.f32.mrf.mxu0
    %v806 = vadd.f32 %v731, %v805
    %v807 = vpop.f32.mrf.mxu0
    %v808 = vadd.f32 %v731, %v807
    %809 = vmatmul.bf16.gmra.mxu0 %v709
    %v810 = vpop.f32.mrf.mxu0
    %v811 = vadd.f32 %v731, %v810
    %v812 = vpop.f32.mrf.mxu0
    %v813 = vadd.f32 %v731, %v812
    %814 = vmatmul.bf16.gmra.mxu0 %v710
    %v815 = vpop.f32.mrf.mxu0
    %v816 = vadd.f32 %v731, %v815
    %v817 = vpop.f32.mrf.mxu0
    %v818 = vadd.f32 %v731, %v817
    %819 = vmatmul.bf16.gmra.mxu0 %v711
    %v820 = vpop.f32.mrf.mxu0
    %v821 = vadd.f32 %v731, %v820
    %v822 = vpop.f32.mrf.mxu0
    %v823 = vadd.f32 %v731, %v822
    %824 = vmatmul.bf16.gmra.mxu0 %v712
    %v825 = vpop.f32.mrf.mxu0
    %v826 = vadd.f32 %v731, %v825
    %v827 = vpop.f32.mrf.mxu0
    %v828 = vadd.f32 %v731, %v827
    %829 = vdwg.mxu0
    %v830 = vxor.u32 %v791, 2147483648
    %v831 = vxor.u32 %v793, 2147483648
    %v832 = vxor.u32 %v796, 2147483648
    %v833 = vxor.u32 %v798, 2147483648
    %v834 = vxor.u32 %v801, 2147483648
    %v835 = vxor.u32 %v803, 2147483648
    %v836 = vxor.u32 %v806, 2147483648
    %v837 = vxor.u32 %v808, 2147483648
    %v838 = vxor.u32 %v811, 2147483648
    %v839 = vxor.u32 %v813, 2147483648
    %v840 = vxor.u32 %v816, 2147483648
    %v841 = vxor.u32 %v818, 2147483648
    %v842 = vxor.u32 %v821, 2147483648
    %v843 = vxor.u32 %v823, 2147483648
    %v844 = vxor.u32 %v826, 2147483648
    %v845 = vxor.u32 %v828, 2147483648
    %v846 = vmul.f32 %v830, 1.442695
    %v847 = vpow.pop %v846
    %v848 = vmul.f32 %v831, 1.442695
    %v849 = vpow.pop %v848
    %v850 = vmul.f32 %v832, 1.442695
    %v851 = vpow.pop %v850
    %v852 = vmul.f32 %v833, 1.442695
    %v853 = vpow.pop %v852
    %v854 = vmul.f32 %v834, 1.442695
    %v855 = vpow.pop %v854
    %v856 = vmul.f32 %v835, 1.442695
    %v857 = vpow.pop %v856
    %v858 = vmul.f32 %v836, 1.442695
    %v859 = vpow.pop %v858
    %v860 = vmul.f32 %v837, 1.442695
    %v861 = vpow.pop %v860
    %v862 = vmul.f32 %v838, 1.442695
    %v863 = vpow.pop %v862
    %v864 = vmul.f32 %v839, 1.442695
    %v865 = vpow.pop %v864
    %v866 = vmul.f32 %v840, 1.442695
    %v867 = vpow.pop %v866
    %v868 = vmul.f32 %v841, 1.442695
    %v869 = vpow.pop %v868
    %v870 = vmul.f32 %v842, 1.442695
    %v871 = vpow.pop %v870
    %v872 = vmul.f32 %v843, 1.442695
    %v873 = vpow.pop %v872
    %v874 = vmul.f32 %v844, 1.442695
    %v875 = vpow.pop %v874
    %v876 = vmul.f32 %v845, 1.442695
    %v877 = vpow.pop %v876
    %v878 = vadd.f32 %v847, 1.0
    %v879 = vadd.f32 %v849, 1.0
    %v880 = vadd.f32 %v851, 1.0
    %v881 = vadd.f32 %v853, 1.0
    %v882 = vadd.f32 %v855, 1.0
    %v883 = vadd.f32 %v857, 1.0
    %v884 = vadd.f32 %v859, 1.0
    %v885 = vadd.f32 %v861, 1.0
    %v886 = vadd.f32 %v863, 1.0
    %v887 = vadd.f32 %v865, 1.0
    %v888 = vadd.f32 %v867, 1.0
    %v889 = vadd.f32 %v869, 1.0
    %v890 = vadd.f32 %v871, 1.0
    %v891 = vadd.f32 %v873, 1.0
    %v892 = vadd.f32 %v875, 1.0
    %v893 = vadd.f32 %v877, 1.0
    %v894 = vrcp.pop %v878
    %v895 = vmul.f32 %v878, %v894
    %v896 = vsub.f32 1.0, %v895
    %v897 = vmul.f32 %v894, %v896
    %v898 = vadd.f32 %v894, %v897
    %vm899 = vweird.f32 %v878
    %vm900 = vweird.f32 %v894
    %vm901 = vmor %vm899, %vm900
    %v902 = vsel %vm901, %v894, %v898
    %v903 = vand.u32 2147483647, %v878
    %vm904 = vcmp.eq.f32.partialorder %v903, 8.507059e+37
    %v905 = vand.u32 %v878, 2147483648
    %v906 = vor.u32 1.1754944e-38, %v905
    %v907 = vsel %vm904, %v906, %v902
    %v908 = vmul.f32 1.0, %v907
    %v909 = vrcp.pop %v879
    %v910 = vmul.f32 %v879, %v909
    %v911 = vsub.f32 1.0, %v910
    %v912 = vmul.f32 %v909, %v911
    %v913 = vadd.f32 %v909, %v912
    %vm914 = vweird.f32 %v879
    %vm915 = vweird.f32 %v909
    %vm916 = vmor %vm914, %vm915
    %v917 = vsel %vm916, %v909, %v913
    %v918 = vand.u32 2147483647, %v879
    %vm919 = vcmp.eq.f32.partialorder %v918, 8.507059e+37
    %v920 = vand.u32 %v879, 2147483648
    %v921 = vor.u32 1.1754944e-38, %v920
    %v922 = vsel %vm919, %v921, %v917
    %v923 = vmul.f32 1.0, %v922
    %v924 = vrcp.pop %v880
    %v925 = vmul.f32 %v880, %v924
    %v926 = vsub.f32 1.0, %v925
    %v927 = vmul.f32 %v924, %v926
    %v928 = vadd.f32 %v924, %v927
    %vm929 = vweird.f32 %v880
    %vm930 = vweird.f32 %v924
    %vm931 = vmor %vm929, %vm930
    %v932 = vsel %vm931, %v924, %v928
    %v933 = vand.u32 2147483647, %v880
    %vm934 = vcmp.eq.f32.partialorder %v933, 8.507059e+37
    %v935 = vand.u32 %v880, 2147483648
    %v936 = vor.u32 1.1754944e-38, %v935
    %v937 = vsel %vm934, %v936, %v932
    %v938 = vmul.f32 1.0, %v937
    %v939 = vrcp.pop %v881
    %v940 = vmul.f32 %v881, %v939
    %v941 = vsub.f32 1.0, %v940
    %v942 = vmul.f32 %v939, %v941
    %v943 = vadd.f32 %v939, %v942
    %vm944 = vweird.f32 %v881
    %vm945 = vweird.f32 %v939
    %vm946 = vmor %vm944, %vm945
    %v947 = vsel %vm946, %v939, %v943
    %v948 = vand.u32 2147483647, %v881
    %vm949 = vcmp.eq.f32.partialorder %v948, 8.507059e+37
    %v950 = vand.u32 %v881, 2147483648
    %v951 = vor.u32 1.1754944e-38, %v950
    %v952 = vsel %vm949, %v951, %v947
    %v953 = vmul.f32 1.0, %v952
    %v954 = vrcp.pop %v882
    %v955 = vmul.f32 %v882, %v954
    %v956 = vsub.f32 1.0, %v955
    %v957 = vmul.f32 %v954, %v956
    %v958 = vadd.f32 %v954, %v957
    %vm959 = vweird.f32 %v882
    %vm960 = vweird.f32 %v954
    %vm961 = vmor %vm959, %vm960
    %v962 = vsel %vm961, %v954, %v958
    %v963 = vand.u32 2147483647, %v882
    %vm964 = vcmp.eq.f32.partialorder %v963, 8.507059e+37
    %v965 = vand.u32 %v882, 2147483648
    %v966 = vor.u32 1.1754944e-38, %v965
    %v967 = vsel %vm964, %v966, %v962
    %v968 = vmul.f32 1.0, %v967
    %v969 = vrcp.pop %v883
    %v970 = vmul.f32 %v883, %v969
    %v971 = vsub.f32 1.0, %v970
    %v972 = vmul.f32 %v969, %v971
    %v973 = vadd.f32 %v969, %v972
    %vm974 = vweird.f32 %v883
    %vm975 = vweird.f32 %v969
    %vm976 = vmor %vm974, %vm975
    %v977 = vsel %vm976, %v969, %v973
    %v978 = vand.u32 2147483647, %v883
    %vm979 = vcmp.eq.f32.partialorder %v978, 8.507059e+37
    %v980 = vand.u32 %v883, 2147483648
    %v981 = vor.u32 1.1754944e-38, %v980
    %v982 = vsel %vm979, %v981, %v977
    %v983 = vmul.f32 1.0, %v982
    %v984 = vrcp.pop %v884
    %v985 = vmul.f32 %v884, %v984
    %v986 = vsub.f32 1.0, %v985
    %v987 = vmul.f32 %v984, %v986
    %v988 = vadd.f32 %v984, %v987
    %vm989 = vweird.f32 %v884
    %vm990 = vweird.f32 %v984
    %vm991 = vmor %vm989, %vm990
    %v992 = vsel %vm991, %v984, %v988
    %v993 = vand.u32 2147483647, %v884
    %vm994 = vcmp.eq.f32.partialorder %v993, 8.507059e+37
    %v995 = vand.u32 %v884, 2147483648
    %v996 = vor.u32 1.1754944e-38, %v995
    %v997 = vsel %vm994, %v996, %v992
    %v998 = vmul.f32 1.0, %v997
    %v999 = vrcp.pop %v885
    %v1000 = vmul.f32 %v885, %v999
    %v1001 = vsub.f32 1.0, %v1000
    %v1002 = vmul.f32 %v999, %v1001
    %v1003 = vadd.f32 %v999, %v1002
    %vm1004 = vweird.f32 %v885
    %vm1005 = vweird.f32 %v999
    %vm1006 = vmor %vm1004, %vm1005
    %v1007 = vsel %vm1006, %v999, %v1003
    %v1008 = vand.u32 2147483647, %v885
    %vm1009 = vcmp.eq.f32.partialorder %v1008, 8.507059e+37
    %v1010 = vand.u32 %v885, 2147483648
    %v1011 = vor.u32 1.1754944e-38, %v1010
    %v1012 = vsel %vm1009, %v1011, %v1007
    %v1013 = vmul.f32 1.0, %v1012
    %v1014 = vrcp.pop %v886
    %v1015 = vmul.f32 %v886, %v1014
    %v1016 = vsub.f32 1.0, %v1015
    %v1017 = vmul.f32 %v1014, %v1016
    %v1018 = vadd.f32 %v1014, %v1017
    %vm1019 = vweird.f32 %v886
    %vm1020 = vweird.f32 %v1014
    %vm1021 = vmor %vm1019, %vm1020
    %v1022 = vsel %vm1021, %v1014, %v1018
    %v1023 = vand.u32 2147483647, %v886
    %vm1024 = vcmp.eq.f32.partialorder %v1023, 8.507059e+37
    %v1025 = vand.u32 %v886, 2147483648
    %v1026 = vor.u32 1.1754944e-38, %v1025
    %v1027 = vsel %vm1024, %v1026, %v1022
    %v1028 = vmul.f32 1.0, %v1027
    %v1029 = vrcp.pop %v887
    %v1030 = vmul.f32 %v887, %v1029
    %v1031 = vsub.f32 1.0, %v1030
    %v1032 = vmul.f32 %v1029, %v1031
    %v1033 = vadd.f32 %v1029, %v1032
    %vm1034 = vweird.f32 %v887
    %vm1035 = vweird.f32 %v1029
    %vm1036 = vmor %vm1034, %vm1035
    %v1037 = vsel %vm1036, %v1029, %v1033
    %v1038 = vand.u32 2147483647, %v887
    %vm1039 = vcmp.eq.f32.partialorder %v1038, 8.507059e+37
    %v1040 = vand.u32 %v887, 2147483648
    %v1041 = vor.u32 1.1754944e-38, %v1040
    %v1042 = vsel %vm1039, %v1041, %v1037
    %v1043 = vmul.f32 1.0, %v1042
    %v1044 = vrcp.pop %v888
    %v1045 = vmul.f32 %v888, %v1044
    %v1046 = vsub.f32 1.0, %v1045
    %v1047 = vmul.f32 %v1044, %v1046
    %v1048 = vadd.f32 %v1044, %v1047
    %vm1049 = vweird.f32 %v888
    %vm1050 = vweird.f32 %v1044
    %vm1051 = vmor %vm1049, %vm1050
    %v1052 = vsel %vm1051, %v1044, %v1048
    %v1053 = vand.u32 2147483647, %v888
    %vm1054 = vcmp.eq.f32.partialorder %v1053, 8.507059e+37
    %v1055 = vand.u32 %v888, 2147483648
    %v1056 = vor.u32 1.1754944e-38, %v1055
    %v1057 = vsel %vm1054, %v1056, %v1052
    %v1058 = vmul.f32 1.0, %v1057
    %v1059 = vrcp.pop %v889
    %v1060 = vmul.f32 %v889, %v1059
    %v1061 = vsub.f32 1.0, %v1060
    %v1062 = vmul.f32 %v1059, %v1061
    %v1063 = vadd.f32 %v1059, %v1062
    %vm1064 = vweird.f32 %v889
    %vm1065 = vweird.f32 %v1059
    %vm1066 = vmor %vm1064, %vm1065
    %v1067 = vsel %vm1066, %v1059, %v1063
    %v1068 = vand.u32 2147483647, %v889
    %vm1069 = vcmp.eq.f32.partialorder %v1068, 8.507059e+37
    %v1070 = vand.u32 %v889, 2147483648
    %v1071 = vor.u32 1.1754944e-38, %v1070
    %v1072 = vsel %vm1069, %v1071, %v1067
    %v1073 = vmul.f32 1.0, %v1072
    %v1074 = vrcp.pop %v890
    %v1075 = vmul.f32 %v890, %v1074
    %v1076 = vsub.f32 1.0, %v1075
    %v1077 = vmul.f32 %v1074, %v1076
    %v1078 = vadd.f32 %v1074, %v1077
    %vm1079 = vweird.f32 %v890
    %vm1080 = vweird.f32 %v1074
    %vm1081 = vmor %vm1079, %vm1080
    %v1082 = vsel %vm1081, %v1074, %v1078
    %v1083 = vand.u32 2147483647, %v890
    %vm1084 = vcmp.eq.f32.partialorder %v1083, 8.507059e+37
    %v1085 = vand.u32 %v890, 2147483648
    %v1086 = vor.u32 1.1754944e-38, %v1085
    %v1087 = vsel %vm1084, %v1086, %v1082
    %v1088 = vmul.f32 1.0, %v1087
    %v1089 = vrcp.pop %v891
    %v1090 = vmul.f32 %v891, %v1089
    %v1091 = vsub.f32 1.0, %v1090
    %v1092 = vmul.f32 %v1089, %v1091
    %v1093 = vadd.f32 %v1089, %v1092
    %vm1094 = vweird.f32 %v891
    %vm1095 = vweird.f32 %v1089
    %vm1096 = vmor %vm1094, %vm1095
    %v1097 = vsel %vm1096, %v1089, %v1093
    %v1098 = vand.u32 2147483647, %v891
    %vm1099 = vcmp.eq.f32.partialorder %v1098, 8.507059e+37
    %v1100 = vand.u32 %v891, 2147483648
    %v1101 = vor.u32 1.1754944e-38, %v1100
    %v1102 = vsel %vm1099, %v1101, %v1097
    %v1103 = vmul.f32 1.0, %v1102
    %v1104 = vrcp.pop %v892
    %v1105 = vmul.f32 %v892, %v1104
    %v1106 = vsub.f32 1.0, %v1105
    %v1107 = vmul.f32 %v1104, %v1106
    %v1108 = vadd.f32 %v1104, %v1107
    %vm1109 = vweird.f32 %v892
    %vm1110 = vweird.f32 %v1104
    %vm1111 = vmor %vm1109, %vm1110
    %v1112 = vsel %vm1111, %v1104, %v1108
    %v1113 = vand.u32 2147483647, %v892
    %vm1114 = vcmp.eq.f32.partialorder %v1113, 8.507059e+37
    %v1115 = vand.u32 %v892, 2147483648
    %v1116 = vor.u32 1.1754944e-38, %v1115
    %v1117 = vsel %vm1114, %v1116, %v1112
    %v1118 = vmul.f32 1.0, %v1117
    %v1119 = vrcp.pop %v893
    %v1120 = vmul.f32 %v893, %v1119
    %v1121 = vsub.f32 1.0, %v1120
    %v1122 = vmul.f32 %v1119, %v1121
    %v1123 = vadd.f32 %v1119, %v1122
    %vm1124 = vweird.f32 %v893
    %vm1125 = vweird.f32 %v1119
    %vm1126 = vmor %vm1124, %vm1125
    %v1127 = vsel %vm1126, %v1119, %v1123
    %v1128 = vand.u32 2147483647, %v893
    %vm1129 = vcmp.eq.f32.partialorder %v1128, 8.507059e+37
    %v1130 = vand.u32 %v893, 2147483648
    %v1131 = vor.u32 1.1754944e-38, %v1130
    %v1132 = vsel %vm1129, %v1131, %v1127
    %v1133 = vmul.f32 1.0, %v1132
    %v1134 = vmul.f32 %v791, %v908
    %v1135 = vmul.f32 %v793, %v923
    %v1136 = vmul.f32 %v796, %v938
    %v1137 = vmul.f32 %v798, %v953
    %v1138 = vmul.f32 %v801, %v968
    %v1139 = vmul.f32 %v803, %v983
    %v1140 = vmul.f32 %v806, %v998
    %v1141 = vmul.f32 %v808, %v1013
    %v1142 = vmul.f32 %v811, %v1028
    %v1143 = vmul.f32 %v813, %v1043
    %v1144 = vmul.f32 %v816, %v1058
    %v1145 = vmul.f32 %v818, %v1073
    %v1146 = vmul.f32 %v821, %v1088
    %v1147 = vmul.f32 %v823, %v1103
    %v1148 = vmul.f32 %v826, %v1118
    %v1149 = vmul.f32 %v828, %v1133
    %v1150 = vpack.c.bf16 %v1135, %v1134
    %v1151 = vpack.c.bf16 %v1137, %v1136
    %v1152 = vpack.c.bf16 %v1139, %v1138
    %v1153 = vpack.c.bf16 %v1141, %v1140
    %v1154 = vpack.c.bf16 %v1143, %v1142
    %v1155 = vpack.c.bf16 %v1145, %v1144
    %v1156 = vpack.c.bf16 %v1147, %v1146
    %v1157 = vpack.c.bf16 %v1149, %v1148
    %v1158 = vld [vmem:[#allocation7] sm:$0xf]
    %v1159 = vld [vmem:[#allocation7 + $0x4] sm:$0xf]
    %v1160 = vld [vmem:[%s7] sm:$0xff]
    %v1161 = vld [vmem:[%s7 + $0x8] sm:$0xff]
    %1163 = vset.pattern.permute.xlu0 0
    %1164 = vperm.xlu0 %1163, %v1160
    %v1165 = vpop.permute.xlu0 %1164
    %1168 = vset.pattern.permute.xlu0 0
    %1169 = vperm.xlu0 %1168, %v1161
    %v1170 = vpop.permute.xlu0 %1169
    %v1174 = vunpack.c.l.b16 %v1158
    %v1175 = vunpack.c.l.b16 %v1159
    %v1176 = vpack.c.b16 %v1175, %v1174
    %1178 = vmatpush.bf16.xpose.msra.mxu0 %v1157
    %1179 = vmatpush.bf16.xpose.msra.mxu0 %v1156
    %1180 = vmatpush.bf16.xpose.msra.mxu0 %v1155
    %1181 = vmatpush.bf16.xpose.msra.mxu0 %v1154
    %1182 = vmatpush.bf16.xpose.msra.mxu0 %v1153
    %1183 = vmatpush.bf16.xpose.msra.mxu0 %v1152
    %1184 = vmatpush.bf16.xpose.msra.mxu0 %v1151
    %1185 = vmatpush.bf16.xpose.msra.mxu0 %v1150
    %1186 = vmatmul.bf16.gmra.mxu0 %v1176
    %v1187 = vpop.f32.mrf.mxu0
    %v1188 = vadd.f32 %v1165, %v1187
    %v1189 = vpop.f32.mrf.mxu0
    %v1190 = vadd.f32 %v1170, %v1189
    %1191 = vdwg.mxu0
    %v1192 = vpack.c.bf16 %v1188, %v1188
    %v1193 = vpack.c.bf16 %v1190, %v1190
    %1194 = vst [vmem:[#allocation8] sm:$0xf] %v1192
    %1195 = vst [vmem:[#allocation8 + $0x4] sm:$0xf] %v1193
    %v1196 = vld [vmem:[%s103] sm:$0x1]
    %v1197 = vperm.slane %v1196, 0
    %vm1198 = vcmp.eq.s32.totalorder %v122, %v1197
    %v1199 = vsel %vm1198, 1, 0
    %v1200 = vcvt.s32.f32 %v1199
    %v1201 = vpack.c.bf16 %v1200, %v1200
    %v1202 = vld [vmem:[#allocation9] sm:$0xff]
    %1211 = vmatpush.bf16.msra.mxu0 %v298
    %1212 = vmatpush.bf16.msra.mxu0 %v297
    %1213 = vmatpush.bf16.msra.mxu0 %v296
    %1214 = vmatpush.bf16.msra.mxu0 %v295
    %1215 = vmatpush.bf16.msra.mxu0 %v294
    %1216 = vmatpush.bf16.msra.mxu0 %v293
    %1217 = vmatpush.bf16.msra.mxu0 %v292
    %1218 = vmatpush.bf16.msra.mxu0 %v291
    %1219 = vmatmul.bf16.gmra.mxu0 %v1201
    %v1220 = vpop.f32.mrf.mxu0
    %v1221 = vadd.f32 0.0, %v1220
    %v1222 = vpop.f32.mrf.mxu0
    %1223 = vdwg.mxu0
    %v1224 = vadd.f32 %v1202, %v1221
    %1225 = vst.msk [vmem:[#allocation9] sm:$0xff] %vm311, %v1224
    // Predicated region
    $region50: #{tpu_custom_call.1} parent=1 // pred_check
      _
    $region51: #{tpu_custom_call.1} parent=1 // pred_check_branch
      %1227 = sbr.rel (0) target = $region53
    $region52: #{tpu_custom_call.1} parent=1 // pred_region
      %s1228 = sadd.s32 0, 0
      %1230 = vsyncadd [#allocation4], 0
      %s1231 = smul.addr %s1228, 4
      %s1232 = scalar_lea.hbm %s8, %s1231
      %s1233 = sshll.u32 [#allocation8], 4
      %s1234 = int_to_ptr.vmem [resolvable:$true] %s1233
      %s1235 = sshll.u32 %s1232, 4
      %s1236 = int_to_ptr.hbm [resolvable:$true] %s1235
      %1241 = dma.vmem_to_hbm [thread:$0]  %s1234, 128, %s1236, [#allocation4], 64, 64, 4
    $region53: #{tpu_custom_call.1} parent=1 // pred_fallthru
      _
    // Predicated region
    $region54: #{tpu_custom_call.1} parent=1 // pred_check
      _
    $region55: #{tpu_custom_call.1} parent=1 // pred_check_branch
      %1243 = sbr.rel (0) target = $region57
    $region56: #{tpu_custom_call.1} parent=1 // pred_region
      %1245 = vsyncadd [#allocation10], 0
      %s1247 = sshll.u32 [#allocation9], 4
      %s1248 = int_to_ptr.vmem [resolvable:$true] %s1247
      %s1249 = sshll.u32 %s9, 4
      %s1250 = int_to_ptr.hbm [resolvable:$true] %s1249
      %1252 = dma.vmem_to_hbm [thread:$0]  %s1248, 128, %s1250, [#allocation10]
    $region57: #{tpu_custom_call.1} parent=1 // pred_fallthru
      _
    // Predicated region
    $region58: #{tpu_custom_call.1} parent=1 // pred_check
      _
    $region59: #{tpu_custom_call.1} parent=1 // pred_check_branch
      %1254 = sbr.rel (0) target = $region61
    $region60: #{tpu_custom_call.1} parent=1 // pred_region
      %1256 = dma.done [#allocation4], 128
    $region61: #{tpu_custom_call.1} parent=1 // pred_fallthru
      _
    // Predicated region
    $region62: #{tpu_custom_call.1} parent=1 // pred_check
      _
    $region63: #{tpu_custom_call.1} parent=1 // pred_check_branch
      %1258 = sbr.rel (0) target = $region65
    $region64: #{tpu_custom_call.1} parent=1 // pred_region
      %1260 = dma.done [#allocation10], 128
    $region65: #{tpu_custom_call.1} parent=1 // pred_fallthru
      _
    %1261 = vsyncpa [#allocation3], 1
    %1262 = vsyncpa [#allocation6], 1
    %1263 = vsyncpa [#allocation4], 1
    %1264 = vsyncpa [#allocation10], 1

</llo_original>
